<compile_context>
chip_gen: v7x
topology: tpu7x:2x2x1
jax: 0.10.0
libtpu: 0.0.40
codegen_flags: <defaults>
</compile_context>

<pallas_src>
import math

import jax
import jax.numpy as jnp
from jax import lax
from jax.experimental import pallas as pl
from jax.experimental.pallas import tpu as pltpu


def bert_gcn_kernel(text_ref, feat_ref, A_ref, wg_ref, wc_ref, bias_ref,
                    out_ref):
    text = text_ref[...]                                    # [TB, H] f32
    H = text.shape[-1]
    L = A_ref.shape[-1]

    bg = bias_ref[0:1, :H]                                  # [1, H]  (GCN bias)
    bc = bias_ref[1:2, :L]                                  # [1, L]  (cls bias)

    # GCNLayer: label_embed = relu(A) @ (features @ W_gcn) + b_gcn
    edges = jnp.maximum(A_ref[...], 0.0)                    # [L, L]
    xw = jnp.dot(feat_ref[...], wg_ref[...],
                 preferred_element_type=jnp.float32)        # [L, H]
    label_embed = jnp.dot(edges, xw,
                          preferred_element_type=jnp.float32) + bg  # [L, H]

    # SelfAttention(queries=text, keys=values=label_embed).
    # Contract last dims directly (no transpose of label_embed).
    scores = lax.dot_general(
        text, label_embed, (((1,), (1,)), ((), ())),
        preferred_element_type=jnp.float32) * (1.0 / math.sqrt(H))  # [TB, L]
    m = jnp.max(scores, axis=-1, keepdims=True)
    e = jnp.exp(scores - m)
    attn = e * pl.reciprocal(jnp.sum(e, axis=-1, keepdims=True), approx=True)
    # attention dropout(p=0.2) is identity in eval mode
    att_out = jnp.dot(attn, label_embed,
                      preferred_element_type=jnp.float32)   # [TB, H]

    # classifier(concat([text, att_out], -1)) with W_cls kept in torch layout
    # [L, 2H]: two lane-dense contractions against 128-aligned slices.
    logits = (
        lax.dot_general(text, wc_ref[:, :H], (((1,), (1,)), ((), ())),
                        preferred_element_type=jnp.float32)
        + lax.dot_general(att_out, wc_ref[:, H:], (((1,), (1,)), ((), ())),
                          preferred_element_type=jnp.float32)
        + bc)                                               # [TB, L]

    out_ref[...] = logits


def _batch_tile(B):
    """Largest tile (multiple of 8, <=256) that evenly divides B, else B."""
    for tb in (256, 128, 64, 32, 16, 8):
        if B % tb == 0:
            return tb
    return B


def bert_gcn_forward(text_output, label_features, A, W_gcn, b_gcn,
                     W_cls, b_cls):
    """Returns (output [B, L], bert_output [B, H]) like BertGCN.forward."""
    B, H = text_output.shape
    L, F = label_features.shape
    assert W_cls.shape == (L, 2 * H)
    assert b_gcn.shape == (H,) and b_cls.shape == (L,)

    # Pack the two small bias vectors into one operand (fewer DMA streams).
    BW = max(H, L)
    bias_pack = jnp.stack([
        jnp.pad(b_gcn.astype(jnp.float32), (0, BW - H)),
        jnp.pad(b_cls.astype(jnp.float32), (0, BW - L)),
    ])                                                      # [2, BW]

    TB = _batch_tile(B)
    grid = (B // TB,)

    def bcast(shape):
        return pl.BlockSpec(shape, lambda i: (0,) * len(shape))

    out = pl.pallas_call(
        bert_gcn_kernel,
        out_shape=jax.ShapeDtypeStruct((B, L), jnp.float32),
        grid_spec=pltpu.PrefetchScalarGridSpec(
            num_scalar_prefetch=0,
            grid=grid,
            in_specs=[pl.BlockSpec((TB, H), lambda i: (i, 0)),  # text (batched)
                      bcast((L, F)),        # label_features
                      bcast((L, L)),        # A
                      bcast((F, H)),        # W_gcn
                      bcast((L, 2 * H)),    # W_cls (native torch layout)
                      bcast((2, BW))],      # packed biases
            out_specs=pl.BlockSpec((TB, L), lambda i: (i, 0)),
        ),
        compiler_params=pltpu.CompilerParams(
            dimension_semantics=("parallel",)),
    )(text_output, label_features, A, W_gcn, W_cls, bias_pack)

    # bert_output is an exact pass-through of text_output; return it directly
    # instead of paying an extra VMEM->HBM writeback in the kernel.
    return out, text_output


def _reference(text_output, label_features, A, W_gcn, b_gcn, W_cls, b_cls):
    edges = jnp.maximum(A, 0.0)
    label_embed = edges @ (label_features @ W_gcn) + b_gcn[None, :]
    H = text_output.shape[-1]
    scores = (text_output @ label_embed.T) / math.sqrt(H)
    attn = jax.nn.softmax(scores, axis=-1)
    att_out = attn @ label_embed
    pooled = jnp.concatenate([text_output, att_out], axis=-1)
    out = pooled @ W_cls.T + b_cls[None, :]
    return out, text_output


if __name__ == "__main__":
    key = jax.random.PRNGKey(0)
    B, S, H = 4, 8, 128      # batch, seq_len, bert hidden size
    L, F = 8, 32             # num labels, label-feature dim
    vocab = 64

    ks = jax.random.split(key, 8)
    input_ids = jax.random.randint(ks[0], (B, S), 0, vocab)
    attention_mask = jnp.ones((B, S), dtype=jnp.int32)  # unused by stand-in

    # Stand-in "BERT": deterministic embedding lookup -> last_hidden_state.
    emb_table = jax.random.normal(ks[1], (vocab, H), jnp.float32) * 0.02
    hidden_output = emb_table[input_ids]                 # [B, S, H]
    text_output = hidden_output[:, 0]                    # [CLS]; dropout = id

    label_features = jax.random.normal(ks[2], (L, F), jnp.float32)
    A = jax.random.normal(ks[3], (L, L), jnp.float32)
    W_gcn = jax.random.normal(ks[4], (F, H), jnp.float32) / math.sqrt(F)
    b_gcn = jnp.zeros((H,), jnp.float32)
    W_cls = jax.random.normal(ks[5], (L, 2 * H), jnp.float32) / math.sqrt(2 * H)
    b_cls = jax.random.normal(ks[6], (L,), jnp.float32) * 0.01

    out, bert_out = bert_gcn_forward(text_output, label_features, A,
                                     W_gcn, b_gcn, W_cls, b_cls)
    jax.block_until_ready((out, bert_out))

    ref_out, ref_bert = _reference(text_output, label_features, A,
                                   W_gcn, b_gcn, W_cls, b_cls)
    assert out.shape == (B, L) and bert_out.shape == (B, H)
    assert jnp.allclose(out, ref_out, rtol=2e-2, atol=2e-2)
    assert jnp.allclose(bert_out, ref_bert)

    print("KERNEL_OK")
</pallas_src>

<mosaic_0001>
module attributes {stable_mosaic.version = 11 : i64} {
  func.func @bert_gcn_kernel(%arg0: i32, %arg1: memref<4x128xf32, #tpu.memory_space<vmem>>, %arg2: memref<8x32xf32, #tpu.memory_space<vmem>>, %arg3: memref<8x8xf32, #tpu.memory_space<vmem>>, %arg4: memref<32x128xf32, #tpu.memory_space<vmem>>, %arg5: memref<8x256xf32, #tpu.memory_space<vmem>>, %arg6: memref<2x128xf32, #tpu.memory_space<vmem>>, %arg7: memref<4x8xf32, #tpu.memory_space<vmem>>) attributes {dimension_semantics = [#tpu.dimension_semantics<parallel>], iteration_bounds = array<i64: 1>, scalar_prefetch = 0 : i64, scratch_operands = 0 : i64, tpu.core_type = #tpu.core_type<tc>, window_params = [{transform_indices = @transform_0, window_bounds = array<i64: 4, 128>}, {pipeline_mode = #tpu.pipeline_mode<synchronous>, transform_indices = @transform_1, window_bounds = array<i64: 8, 32>}, {pipeline_mode = #tpu.pipeline_mode<synchronous>, transform_indices = @transform_2, window_bounds = array<i64: 8, 8>}, {pipeline_mode = #tpu.pipeline_mode<synchronous>, transform_indices = @transform_3, window_bounds = array<i64: 32, 128>}, {pipeline_mode = #tpu.pipeline_mode<synchronous>, transform_indices = @transform_4, window_bounds = array<i64: 8, 256>}, {pipeline_mode = #tpu.pipeline_mode<synchronous>, transform_indices = @transform_5, window_bounds = array<i64: 2, 128>}, {transform_indices = @transform_6, window_bounds = array<i64: 4, 8>}]} {
    %c0 = arith.constant 0 : index
    %c0_0 = arith.constant 0 : index
    %0 = vector.load %arg1[%c0, %c0_0] : memref<4x128xf32, #tpu.memory_space<vmem>>, vector<4x128xf32>
    %c0_1 = arith.constant 0 : index
    %c0_2 = arith.constant 0 : index
    %1 = vector.load %arg6[%c0_1, %c0_2] : memref<2x128xf32, #tpu.memory_space<vmem>>, vector<1x128xf32>
    %c1 = arith.constant 1 : index
    %c0_3 = arith.constant 0 : index
    %2 = vector.load %arg6[%c1, %c0_3] : memref<2x128xf32, #tpu.memory_space<vmem>>, vector<1x8xf32>
    %c0_4 = arith.constant 0 : index
    %c0_5 = arith.constant 0 : index
    %3 = vector.load %arg3[%c0_4, %c0_5] : memref<8x8xf32, #tpu.memory_space<vmem>>, vector<8x8xf32>
    %cst = arith.constant 0.000000e+00 : f32
    %4 = vector.broadcast %cst : f32 to vector<8x8xf32>
    %5 = arith.maximumf %3, %4 : vector<8x8xf32>
    %c0_6 = arith.constant 0 : index
    %c0_7 = arith.constant 0 : index
    %6 = vector.load %arg2[%c0_6, %c0_7] : memref<8x32xf32, #tpu.memory_space<vmem>>, vector<8x32xf32>
    %c0_8 = arith.constant 0 : index
    %c0_9 = arith.constant 0 : index
    %7 = vector.load %arg4[%c0_8, %c0_9] : memref<32x128xf32, #tpu.memory_space<vmem>>, vector<32x128xf32>
    %cst_10 = arith.constant dense<0.000000e+00> : vector<8x128xf32>
    %8 = tpu.matmul %6, %7, %cst_10 {dimension_numbers = #tpu.dot_dimension_numbers<[1], [0], [0], [1], [0, 0, 1, 1], [], []>} : vector<8x32xf32>, vector<32x128xf32>, vector<8x128xf32> -> vector<8x128xf32>
    %cst_11 = arith.constant dense<0.000000e+00> : vector<8x128xf32>
    %9 = tpu.matmul %5, %8, %cst_11 {dimension_numbers = #tpu.dot_dimension_numbers<[1], [0], [0], [1], [0, 0, 1, 1], [], []>} : vector<8x8xf32>, vector<8x128xf32>, vector<8x128xf32> -> vector<8x128xf32>
    %10 = vector.broadcast %1 : vector<1x128xf32> to vector<8x128xf32>
    %11 = arith.addf %9, %10 : vector<8x128xf32>
    %cst_12 = arith.constant dense<0.000000e+00> : vector<4x8xf32>
    %12 = tpu.matmul %0, %11, %cst_12 {dimension_numbers = #tpu.dot_dimension_numbers<[1], [1], [0], [0], [0, 0, 1, 0], [], []>} : vector<4x128xf32>, vector<8x128xf32>, vector<4x8xf32> -> vector<4x8xf32>
    %cst_13 = arith.constant 0.0883883461 : f32
    %13 = vector.broadcast %cst_13 : f32 to vector<4x8xf32>
    %14 = arith.mulf %12, %13 : vector<4x8xf32>
    %cst_14 = arith.constant dense<0xFF800000> : vector<4xf32>
    %15 = vector.multi_reduction <maximumf>, %14, %cst_14 [1] : vector<4x8xf32> to vector<4xf32>
    %16 = vector.shape_cast %15 : vector<4xf32> to vector<4x1xf32>
    %17 = vector.broadcast %16 : vector<4x1xf32> to vector<4x8xf32>
    %18 = arith.subf %14, %17 : vector<4x8xf32>
    %19 = math.exp %18 : vector<4x8xf32>
    %cst_15 = arith.constant dense<0.000000e+00> : vector<4xf32>
    %20 = vector.multi_reduction <add>, %19, %cst_15 [1] : vector<4x8xf32> to vector<4xf32>
    %21 = vector.shape_cast %20 : vector<4xf32> to vector<4x1xf32>
    %22 = tpu.reciprocal %21 {approx = true} : vector<4x1xf32> -> vector<4x1xf32>
    %23 = vector.broadcast %22 : vector<4x1xf32> to vector<4x8xf32>
    %24 = arith.mulf %19, %23 : vector<4x8xf32>
    %cst_16 = arith.constant dense<0.000000e+00> : vector<4x128xf32>
    %25 = tpu.matmul %24, %11, %cst_16 {dimension_numbers = #tpu.dot_dimension_numbers<[1], [0], [0], [1], [0, 0, 1, 1], [], []>} : vector<4x8xf32>, vector<8x128xf32>, vector<4x128xf32> -> vector<4x128xf32>
    %c0_17 = arith.constant 0 : index
    %c0_18 = arith.constant 0 : index
    %26 = vector.load %arg5[%c0_17, %c0_18] : memref<8x256xf32, #tpu.memory_space<vmem>>, vector<8x128xf32>
    %cst_19 = arith.constant dense<0.000000e+00> : vector<4x8xf32>
    %27 = tpu.matmul %0, %26, %cst_19 {dimension_numbers = #tpu.dot_dimension_numbers<[1], [1], [0], [0], [0, 0, 1, 0], [], []>} : vector<4x128xf32>, vector<8x128xf32>, vector<4x8xf32> -> vector<4x8xf32>
    %c0_20 = arith.constant 0 : index
    %c128 = arith.constant 128 : index
    %28 = vector.load %arg5[%c0_20, %c128] : memref<8x256xf32, #tpu.memory_space<vmem>>, vector<8x128xf32>
    %cst_21 = arith.constant dense<0.000000e+00> : vector<4x8xf32>
    %29 = tpu.matmul %25, %28, %cst_21 {dimension_numbers = #tpu.dot_dimension_numbers<[1], [1], [0], [0], [0, 0, 1, 0], [], []>} : vector<4x128xf32>, vector<8x128xf32>, vector<4x8xf32> -> vector<4x8xf32>
    %30 = arith.addf %27, %29 : vector<4x8xf32>
    %31 = vector.broadcast %2 : vector<1x8xf32> to vector<4x8xf32>
    %32 = arith.addf %30, %31 : vector<4x8xf32>
    %c0_22 = arith.constant 0 : index
    %c0_23 = arith.constant 0 : index
    %33 = vector.load %arg7[%c0_22, %c0_23] : memref<4x8xf32, #tpu.memory_space<vmem>>, vector<4x8xf32>
    tpu.vector_store %arg7[%c0_22, %c0_23], %32 {strides = array<i32>} : memref<4x8xf32, #tpu.memory_space<vmem>>, vector<4x8xf32>,
    return
  }
  func.func @transform_0(%arg0: i32) -> (i32, i32) {
    %c0_i32 = arith.constant 0 : i32
    %c0_i32_0 = arith.constant 0 : i32
    return %arg0, %c0_i32 : i32, i32
  }
  func.func @transform_1(%arg0: i32) -> (i32, i32) {
    %c0_i32 = arith.constant 0 : i32
    %c0_i32_0 = arith.constant 0 : i32
    %c0_i32_1 = arith.constant 0 : i32
    return %c0_i32, %c0_i32_0 : i32, i32
  }
  func.func @transform_2(%arg0: i32) -> (i32, i32) {
    %c0_i32 = arith.constant 0 : i32
    %c0_i32_0 = arith.constant 0 : i32
    %c0_i32_1 = arith.constant 0 : i32
    return %c0_i32, %c0_i32_0 : i32, i32
  }
  func.func @transform_3(%arg0: i32) -> (i32, i32) {
    %c0_i32 = arith.constant 0 : i32
    %c0_i32_0 = arith.constant 0 : i32
    %c0_i32_1 = arith.constant 0 : i32
    return %c0_i32, %c0_i32_0 : i32, i32
  }
  func.func @transform_4(%arg0: i32) -> (i32, i32) {
    %c0_i32 = arith.constant 0 : i32
    %c0_i32_0 = arith.constant 0 : i32
    %c0_i32_1 = arith.constant 0 : i32
    return %c0_i32, %c0_i32_0 : i32, i32
  }
  func.func @transform_5(%arg0: i32) -> (i32, i32) {
    %c0_i32 = arith.constant 0 : i32
    %c0_i32_0 = arith.constant 0 : i32
    %c0_i32_1 = arith.constant 0 : i32
    return %c0_i32, %c0_i32_0 : i32, i32
  }
  func.func @transform_6(%arg0: i32) -> (i32, i32) {
    %c0_i32 = arith.constant 0 : i32
    %c0_i32_0 = arith.constant 0 : i32
    return %arg0, %c0_i32 : i32, i32
  }
}

</mosaic_0001>

<llo_original>
// kernel: tpu_custom_call.1
$region0: #{tpu_custom_call.1}
  #allocation0 [shape = 'u32[]', space=smem, size = 0x4, offset = 0x4, fixed_abs, tag = 'smem constant byte address 0x4 - core index']
  #allocation1 [shape = 'u32[144,128]{1,0:T(1,128)}', space=vmem, size = 0x12000, scoped, tag = 'internal scratch']
  %s0 = inlined_call_operand.hbm [shape: f32[4,128], index: 0, kind: input, shape index: {}]
  %s1 = inlined_call_operand.hbm [shape: f32[8,32], index: 1, kind: input, shape index: {}]
  %s2 = inlined_call_operand.hbm [shape: f32[8,8], index: 2, kind: input, shape index: {}]
  %s3 = inlined_call_operand.hbm [shape: f32[32,128], index: 3, kind: input, shape index: {}]
  %s4 = inlined_call_operand.hbm [shape: f32[8,256], index: 4, kind: input, shape index: {}]
  %s5 = inlined_call_operand.vmem [shape: f32[2,128], index: 5, kind: input, shape index: {}]
  %s6 = inlined_call_operand.hbm [shape: f32[4,8], index: 6, kind: output, shape index: {}]
  %s7 = sld [smem:[#allocation0]]
  $region54: #{tpu_custom_call.1} parent=0
    _
  %s9 = ssub.s32 1, %s7
  %s10 = scalar_select 0, %s9, %s7
  $region1: #{tpu_custom_call.1} parent=0
    #allocation2 [shape = 'u8[2048]{0}', space=vmem, size = 0x800, scoped, tag = 'input window, operand 0, single buffered']
    #allocation3 [shape = 's32[1]{0}', space=sflag, size = 0x4, scoped, tag = 'scoped memory for tpu_custom_call.1']
    #allocation4 [shape = 's32[1]{0}', space=sflag, size = 0x4, scoped, tag = 'scoped memory for tpu_custom_call.1']
    #allocation5 [shape = 'u8[4096]{0}', space=vmem, size = 0x1000, scoped, tag = 'input window, operand 1, single buffered']
    #allocation6 [shape = 's32[1]{0}', space=sflag, size = 0x4, scoped, tag = 'scoped memory for tpu_custom_call.1']
    #allocation7 [shape = 'u8[4096]{0}', space=vmem, size = 0x1000, scoped, tag = 'input window, operand 2, single buffered']
    #allocation8 [shape = 'u8[16384]{0}', space=vmem, size = 0x4000, scoped, tag = 'input window, operand 3, single buffered']
    #allocation9 [shape = 's32[1]{0}', space=sflag, size = 0x4, scoped, tag = 'scoped memory for tpu_custom_call.1']
    #allocation10 [shape = 'u8[8192]{0}', space=vmem, size = 0x2000, scoped, tag = 'input window, operand 4, single buffered']
    #allocation11 [shape = 'u8[2048]{0}', space=vmem, size = 0x800, scoped, tag = 'output window, operand 0, single buffered']
    %11 = vsyncpa [#allocation3], 0
    %12 = vsyncpa [#allocation6], 0
    %13 = vsyncpa [#allocation9], 0
    %14 = vsyncpa [#allocation4], 0
    // Predicated region
    $region2: #{tpu_custom_call.1} parent=1 // pred_check
      _
    $region3: #{tpu_custom_call.1} parent=1 // pred_check_branch
      %16 = sbr.rel (0) target = $region5
    $region4: #{tpu_custom_call.1} parent=1 // pred_region
      %s18 = ssub.s32 64, 64
      %19 = vsyncadd [#allocation3], %s18
      %s21 = sshll.u32 [#allocation2], 4
      %s22 = int_to_ptr.vmem [resolvable:$true] %s21
      %24 = dma.hbm_to_vmem [thread:$0]  %s0, 64, %s22, [#allocation3]
    $region5: #{tpu_custom_call.1} parent=1 // pred_fallthru
      _
    // Predicated region
    $region6: #{tpu_custom_call.1} parent=1 // pred_check
      _
    $region7: #{tpu_custom_call.1} parent=1 // pred_check_branch
      %26 = sbr.rel (0) target = $region9
    $region8: #{tpu_custom_call.1} parent=1 // pred_region
      %s28 = ssub.s32 128, 128
      %29 = vsyncadd [#allocation6], %s28
      %s31 = sshll.u32 [#allocation5], 4
      %s32 = int_to_ptr.vmem [resolvable:$true] %s31
      %34 = dma.hbm_to_vmem [thread:$0]  %s1, 128, %s32, [#allocation6]
    $region9: #{tpu_custom_call.1} parent=1 // pred_fallthru
      _
    // Predicated region
    $region10: #{tpu_custom_call.1} parent=1 // pred_check
      _
    $region11: #{tpu_custom_call.1} parent=1 // pred_check_branch
      %36 = sbr.rel (0) target = $region13
    $region12: #{tpu_custom_call.1} parent=1 // pred_region
      %s38 = ssub.s32 128, 128
      %39 = vsyncadd [#allocation6], %s38
      %s41 = sshll.u32 [#allocation7], 4
      %s42 = int_to_ptr.vmem [resolvable:$true] %s41
      %44 = dma.hbm_to_vmem [thread:$0]  %s2, 128, %s42, [#allocation6]
    $region13: #{tpu_custom_call.1} parent=1 // pred_fallthru
      _
    // Predicated region
    $region14: #{tpu_custom_call.1} parent=1 // pred_check
      _
    $region15: #{tpu_custom_call.1} parent=1 // pred_check_branch
      %46 = sbr.rel (0) target = $region17
    $region16: #{tpu_custom_call.1} parent=1 // pred_region
      %s48 = ssub.s32 512, 512
      %49 = vsyncadd [#allocation9], %s48
      %s50 = sshll.u32 [#allocation8], 4
      %s51 = int_to_ptr.vmem [resolvable:$true] %s50
      %56 = dma.hbm_to_vmem [thread:$0]  %s3, 512, %s51, [#allocation9], 128, 128, 8
    $region17: #{tpu_custom_call.1} parent=1 // pred_fallthru
      _
    // Predicated region
    $region18: #{tpu_custom_call.1} parent=1 // pred_check
      _
    $region19: #{tpu_custom_call.1} parent=1 // pred_check_branch
      %58 = sbr.rel (0) target = $region21
    $region20: #{tpu_custom_call.1} parent=1 // pred_region
      %s60 = ssub.s32 256, 256
      %61 = vsyncadd [#allocation9], %s60
      %s63 = sshll.u32 [#allocation10], 4
      %s64 = int_to_ptr.vmem [resolvable:$true] %s63
      %66 = dma.hbm_to_vmem [thread:$0]  %s4, 256, %s64, [#allocation9]
    $region21: #{tpu_custom_call.1} parent=1 // pred_fallthru
      _
    // Predicated region
    $region22: #{tpu_custom_call.1} parent=1 // pred_check
      _
    $region23: #{tpu_custom_call.1} parent=1 // pred_check_branch
      %68 = sbr.rel (0) target = $region25
    $region24: #{tpu_custom_call.1} parent=1 // pred_region
      _
    $region25: #{tpu_custom_call.1} parent=1 // pred_fallthru
      _
    // Predicated region
    $region26: #{tpu_custom_call.1} parent=1 // pred_check
      _
    $region27: #{tpu_custom_call.1} parent=1 // pred_check_branch
      %70 = sbr.rel (0) target = $region29
    $region28: #{tpu_custom_call.1} parent=1 // pred_region
      %71 = dma.done [#allocation3], 64
    $region29: #{tpu_custom_call.1} parent=1 // pred_fallthru
      _
    // Predicated region
    $region30: #{tpu_custom_call.1} parent=1 // pred_check
      _
    $region31: #{tpu_custom_call.1} parent=1 // pred_check_branch
      %73 = sbr.rel (0) target = $region33
    $region32: #{tpu_custom_call.1} parent=1 // pred_region
      %74 = dma.done [#allocation6], 128
    $region33: #{tpu_custom_call.1} parent=1 // pred_fallthru
      _
    // Predicated region
    $region34: #{tpu_custom_call.1} parent=1 // pred_check
      _
    $region35: #{tpu_custom_call.1} parent=1 // pred_check_branch
      %76 = sbr.rel (0) target = $region37
    $region36: #{tpu_custom_call.1} parent=1 // pred_region
      %77 = dma.done [#allocation6], 128
    $region37: #{tpu_custom_call.1} parent=1 // pred_fallthru
      _
    // Predicated region
    $region38: #{tpu_custom_call.1} parent=1 // pred_check
      _
    $region39: #{tpu_custom_call.1} parent=1 // pred_check_branch
      %79 = sbr.rel (0) target = $region41
    $region40: #{tpu_custom_call.1} parent=1 // pred_region
      %80 = dma.done [#allocation9], 512
    $region41: #{tpu_custom_call.1} parent=1 // pred_fallthru
      _
    // Predicated region
    $region42: #{tpu_custom_call.1} parent=1 // pred_check
      _
    $region43: #{tpu_custom_call.1} parent=1 // pred_check_branch
      %82 = sbr.rel (0) target = $region45
    $region44: #{tpu_custom_call.1} parent=1 // pred_region
      %83 = dma.done [#allocation9], 256
    $region45: #{tpu_custom_call.1} parent=1 // pred_fallthru
      _
    %v84 = vld [vmem:[#allocation2] sm:$0xf]
    %v85 = vld [vmem:[%s5] sm:$0x1]
    %v86 = vld [vmem:[%s5 + $0x1] sm:$0x1]
    %v87 = vld [vmem:[#allocation7] sm:$0xff]
    %v88 = vmax.f32 %v87, 0.0
    %v89 = vld [vmem:[#allocation5] sm:$0xff]
    %v90 = vld [vmem:[#allocation8] sm:$0xff]
    %v91 = vld [vmem:[#allocation8 + $0x8] sm:$0xff]
    %v92 = vld [vmem:[#allocation8 + $0x10] sm:$0xff]
    %v93 = vld [vmem:[#allocation8 + $0x18] sm:$0xff]
    %vm94 = vcmask 261120
    %v96 = vsel %vm94, %v89, 0
    %98 = vmatprep.subr.mxu0 0.0
    %99 = vmatpush1.msra.mxu0 %v90
    %100 = vmatprep.subr.mxu0 0.0
    %101 = vmatpush1.msra.mxu0 %v91
    %102 = vmatprep.subr.mxu0 0.0
    %103 = vmatpush1.msra.mxu0 %v92
    %104 = vmatprep.subr.mxu0 0.0
    %105 = vmatpush1.msra.mxu0 %v93
    %106 = vmatprep.subr.mxu0 0.0
    %107 = vmatpush1.msra.mxu0 0.0
    %108 = vmatprep.subr.mxu0 0.0
    %109 = vmatpush1.msra.mxu0 0.0
    %110 = vmatprep.subr.mxu0 0.0
    %111 = vmatpush1.msra.mxu0 0.0
    %112 = vmatprep.subr.mxu0 0.0
    %113 = vmatpush1.msra.mxu0 0.0
    %114 = vmatprep.subr.mxu0 0.0
    %115 = vmatpush1.msra.mxu0 0.0
    %116 = vmatprep.subr.mxu0 0.0
    %117 = vmatpush1.msra.mxu0 0.0
    %118 = vmatprep.subr.mxu0 0.0
    %119 = vmatpush1.msra.mxu0 0.0
    %120 = vmatprep.subr.mxu0 0.0
    %121 = vmatpush1.msra.mxu0 0.0
    %122 = vmatprep.subr.mxu0 0.0
    %123 = vmatpush1.msra.mxu0 0.0
    %124 = vmatprep.subr.mxu0 0.0
    %125 = vmatpush1.msra.mxu0 0.0
    %126 = vmatprep.subr.mxu0 0.0
    %127 = vmatpush1.msra.mxu0 0.0
    %128 = vmatprep.subr.mxu0 0.0
    %129 = vmatpush1.msra.mxu0 0.0
    %130 = vmatprep.subr.mxu0 0.0
    %131 = vmatpush1.msra.mxu0 0.0
    %132 = vmatprep.subr.mxu0 0.0
    %133 = vmatpush1.msra.mxu0 0.0
    %134 = vmatprep.subr.mxu0 0.0
    %135 = vmatpush1.msra.mxu0 0.0
    %136 = vmatprep.subr.mxu0 0.0
    %137 = vmatpush1.msra.mxu0 0.0
    %138 = vmatprep.subr.mxu0 0.0
    %139 = vmatpush1.msra.mxu0 0.0
    %140 = vmatprep.subr.mxu0 0.0
    %141 = vmatpush1.msra.mxu0 0.0
    %142 = vmatprep.subr.mxu0 0.0
    %143 = vmatpush1.msra.mxu0 0.0
    %144 = vmatprep.subr.mxu0 0.0
    %145 = vmatpush1.msra.mxu0 0.0
    %146 = vmatprep.subr.mxu0 0.0
    %147 = vmatpush1.msra.mxu0 0.0
    %148 = vmatprep.subr.mxu0 0.0
    %149 = vmatpush1.msra.mxu0 0.0
    %150 = vmatprep.subr.mxu0 0.0
    %151 = vmatpush1.msra.mxu0 0.0
    %152 = vmatprep.subr.mxu0 0.0
    %153 = vmatpush1.msra.mxu0 0.0
    %154 = vmatprep.subr.mxu0 0.0
    %155 = vmatpush1.msra.mxu0 0.0
    %156 = vmatprep.subr.mxu0 0.0
    %157 = vmatpush1.msra.mxu0 0.0
    %158 = vmatprep.subr.mxu0 0.0
    %159 = vmatpush1.msra.mxu0 0.0
    %160 = vmatprep.subr.mxu0 0.0
    %161 = vmatpush1.msra.mxu0 0.0
    %162 = vmatprep.mubr.f32.mxu0 0.0
    %163 = vmatmul.mubr.f32.gmra.mrb[0].mxu0 %v96
    %v164 = vpop.f32.mrb[0].mxu0
    %v165 = vadd.f32 0.0, %v164
    %v166 = vpop.f32.mrb[0].mxu0
    %167 = vdwg.mxu0
    %v168 = vlaneseq
    %v169 = vshrl.u32 %v168, 7
    %v170 = vsub.s32 0, %v169
    %v171 = vrot.slane %v85, %v170
    %vm172 = vcmask 64512
    %v174 = vsel %vm172, %v88, 0
    %176 = vmatprep.subr.mxu0 0.0
    %177 = vmatpush1.msra.mxu0 %v165
    %178 = vmatprep.subr.mxu0 0.0
    %179 = vmatpush1.msra.mxu0 0.0
    %180 = vmatprep.subr.mxu0 0.0
    %181 = vmatpush1.msra.mxu0 0.0
    %182 = vmatprep.subr.mxu0 0.0
    %183 = vmatpush1.msra.mxu0 0.0
    %184 = vmatprep.subr.mxu0 0.0
    %185 = vmatpush1.msra.mxu0 0.0
    %186 = vmatprep.subr.mxu0 0.0
    %187 = vmatpush1.msra.mxu0 0.0
    %188 = vmatprep.subr.mxu0 0.0
    %189 = vmatpush1.msra.mxu0 0.0
    %190 = vmatprep.subr.mxu0 0.0
    %191 = vmatpush1.msra.mxu0 0.0
    %192 = vmatprep.subr.mxu0 0.0
    %193 = vmatpush1.msra.mxu0 0.0
    %194 = vmatprep.subr.mxu0 0.0
    %195 = vmatpush1.msra.mxu0 0.0
    %196 = vmatprep.subr.mxu0 0.0
    %197 = vmatpush1.msra.mxu0 0.0
    %198 = vmatprep.subr.mxu0 0.0
    %199 = vmatpush1.msra.mxu0 0.0
    %200 = vmatprep.subr.mxu0 0.0
    %201 = vmatpush1.msra.mxu0 0.0
    %202 = vmatprep.subr.mxu0 0.0
    %203 = vmatpush1.msra.mxu0 0.0
    %204 = vmatprep.subr.mxu0 0.0
    %205 = vmatpush1.msra.mxu0 0.0
    %206 = vmatprep.subr.mxu0 0.0
    %207 = vmatpush1.msra.mxu0 0.0
    %208 = vmatprep.subr.mxu0 0.0
    %209 = vmatpush1.msra.mxu0 0.0
    %210 = vmatprep.subr.mxu0 0.0
    %211 = vmatpush1.msra.mxu0 0.0
    %212 = vmatprep.subr.mxu0 0.0
    %213 = vmatpush1.msra.mxu0 0.0
    %214 = vmatprep.subr.mxu0 0.0
    %215 = vmatpush1.msra.mxu0 0.0
    %216 = vmatprep.subr.mxu0 0.0
    %217 = vmatpush1.msra.mxu0 0.0
    %218 = vmatprep.subr.mxu0 0.0
    %219 = vmatpush1.msra.mxu0 0.0
    %220 = vmatprep.subr.mxu0 0.0
    %221 = vmatpush1.msra.mxu0 0.0
    %222 = vmatprep.subr.mxu0 0.0
    %223 = vmatpush1.msra.mxu0 0.0
    %224 = vmatprep.subr.mxu0 0.0
    %225 = vmatpush1.msra.mxu0 0.0
    %226 = vmatprep.subr.mxu0 0.0
    %227 = vmatpush1.msra.mxu0 0.0
    %228 = vmatprep.subr.mxu0 0.0
    %229 = vmatpush1.msra.mxu0 0.0
    %230 = vmatprep.subr.mxu0 0.0
    %231 = vmatpush1.msra.mxu0 0.0
    %232 = vmatprep.subr.mxu0 0.0
    %233 = vmatpush1.msra.mxu0 0.0
    %234 = vmatprep.subr.mxu0 0.0
    %235 = vmatpush1.msra.mxu0 0.0
    %236 = vmatprep.subr.mxu0 0.0
    %237 = vmatpush1.msra.mxu0 0.0
    %238 = vmatprep.subr.mxu0 0.0
    %239 = vmatpush1.msra.mxu0 0.0
    %240 = vmatprep.mubr.f32.mxu0 0.0
    %241 = vmatmul.mubr.f32.gmra.mrb[0].mxu0 %v174
    %v242 = vpop.f32.mrb[0].mxu0
    %v243 = vadd.f32 %v171, %v242
    %v244 = vpop.f32.mrb[0].mxu0
    %245 = vdwg.mxu0
    %246 = vmatprep.subr.mxu0 0.0
    %247 = vmatpush1.xpose.msra.mxu0 %v243
    %248 = vmatprep.subr.mxu0 0.0
    %249 = vmatpush1.xpose.msra.mxu0 0.0
    %250 = vmatprep.subr.mxu0 0.0
    %251 = vmatpush1.xpose.msra.mxu0 0.0
    %252 = vmatprep.subr.mxu0 0.0
    %253 = vmatpush1.xpose.msra.mxu0 0.0
    %254 = vmatprep.subr.mxu0 0.0
    %255 = vmatpush1.xpose.msra.mxu0 0.0
    %256 = vmatprep.subr.mxu0 0.0
    %257 = vmatpush1.xpose.msra.mxu0 0.0
    %258 = vmatprep.subr.mxu0 0.0
    %259 = vmatpush1.xpose.msra.mxu0 0.0
    %260 = vmatprep.subr.mxu0 0.0
    %261 = vmatpush1.xpose.msra.mxu0 0.0
    %262 = vmatprep.subr.mxu0 0.0
    %263 = vmatpush1.xpose.msra.mxu0 0.0
    %264 = vmatprep.subr.mxu0 0.0
    %265 = vmatpush1.xpose.msra.mxu0 0.0
    %266 = vmatprep.subr.mxu0 0.0
    %267 = vmatpush1.xpose.msra.mxu0 0.0
    %268 = vmatprep.subr.mxu0 0.0
    %269 = vmatpush1.xpose.msra.mxu0 0.0
    %270 = vmatprep.subr.mxu0 0.0
    %271 = vmatpush1.xpose.msra.mxu0 0.0
    %272 = vmatprep.subr.mxu0 0.0
    %273 = vmatpush1.xpose.msra.mxu0 0.0
    %274 = vmatprep.subr.mxu0 0.0
    %275 = vmatpush1.xpose.msra.mxu0 0.0
    %276 = vmatprep.subr.mxu0 0.0
    %277 = vmatpush1.xpose.msra.mxu0 0.0
    %278 = vmatprep.subr.mxu0 0.0
    %279 = vmatpush1.xpose.msra.mxu0 0.0
    %280 = vmatprep.subr.mxu0 0.0
    %281 = vmatpush1.xpose.msra.mxu0 0.0
    %282 = vmatprep.subr.mxu0 0.0
    %283 = vmatpush1.xpose.msra.mxu0 0.0
    %284 = vmatprep.subr.mxu0 0.0
    %285 = vmatpush1.xpose.msra.mxu0 0.0
    %286 = vmatprep.subr.mxu0 0.0
    %287 = vmatpush1.xpose.msra.mxu0 0.0
    %288 = vmatprep.subr.mxu0 0.0
    %289 = vmatpush1.xpose.msra.mxu0 0.0
    %290 = vmatprep.subr.mxu0 0.0
    %291 = vmatpush1.xpose.msra.mxu0 0.0
    %292 = vmatprep.subr.mxu0 0.0
    %293 = vmatpush1.xpose.msra.mxu0 0.0
    %294 = vmatprep.subr.mxu0 0.0
    %295 = vmatpush1.xpose.msra.mxu0 0.0
    %296 = vmatprep.subr.mxu0 0.0
    %297 = vmatpush1.xpose.msra.mxu0 0.0
    %298 = vmatprep.subr.mxu0 0.0
    %299 = vmatpush1.xpose.msra.mxu0 0.0
    %300 = vmatprep.subr.mxu0 0.0
    %301 = vmatpush1.xpose.msra.mxu0 0.0
    %302 = vmatprep.subr.mxu0 0.0
    %303 = vmatpush1.xpose.msra.mxu0 0.0
    %304 = vmatprep.subr.mxu0 0.0
    %305 = vmatpush1.xpose.msra.mxu0 0.0
    %306 = vmatprep.subr.mxu0 0.0
    %307 = vmatpush1.xpose.msra.mxu0 0.0
    %308 = vmatprep.subr.mxu0 0.0
    %309 = vmatpush1.xpose.msra.mxu0 0.0
    %310 = vmatprep.mubr.f32.mxu0 0.0
    %311 = vmatmul.mubr.f32.gmra.mrb[0].mxu0 %v84
    %v312 = vpop.f32.mrb[0].mxu0
    %v313 = vadd.f32 0.0, %v312
    %v314 = vpop.f32.mrb[0].mxu0
    %315 = vdwg.mxu0
    %v316 = vmul.f32 %v313, 0.088388346
    %vm317 = vcmask 60416
    %v318 = vsel %vm317, %v316, -inf
    %319 = vmax.xlane.f32.xlu0 %v318
    %v320 = vpop.xlane.xlu0 %319
    %v321 = vsub.f32 %v316, %v320
    %v322 = vmul.f32 %v321, 1.442695
    %v323 = vpow.pop %v322
    %v324 = vsel %vm317, %v323, 0.0
    %325 = vadd.xlane.f32.xlu0 %v324
    %v326 = vpop.xlane.xlu0 %325
    %v327 = vrcp.pop %v326
    %v328 = vmul.f32 %v323, %v327
    %v330 = vsel %vm172, %v328, 0
    %332 = vmatprep.subr.mxu0 0.0
    %333 = vmatpush1.msra.mxu0 %v243
    %334 = vmatprep.subr.mxu0 0.0
    %335 = vmatpush1.msra.mxu0 0.0
    %336 = vmatprep.subr.mxu0 0.0
    %337 = vmatpush1.msra.mxu0 0.0
    %338 = vmatprep.subr.mxu0 0.0
    %339 = vmatpush1.msra.mxu0 0.0
    %340 = vmatprep.subr.mxu0 0.0
    %341 = vmatpush1.msra.mxu0 0.0
    %342 = vmatprep.subr.mxu0 0.0
    %343 = vmatpush1.msra.mxu0 0.0
    %344 = vmatprep.subr.mxu0 0.0
    %345 = vmatpush1.msra.mxu0 0.0
    %346 = vmatprep.subr.mxu0 0.0
    %347 = vmatpush1.msra.mxu0 0.0
    %348 = vmatprep.subr.mxu0 0.0
    %349 = vmatpush1.msra.mxu0 0.0
    %350 = vmatprep.subr.mxu0 0.0
    %351 = vmatpush1.msra.mxu0 0.0
    %352 = vmatprep.subr.mxu0 0.0
    %353 = vmatpush1.msra.mxu0 0.0
    %354 = vmatprep.subr.mxu0 0.0
    %355 = vmatpush1.msra.mxu0 0.0
    %356 = vmatprep.subr.mxu0 0.0
    %357 = vmatpush1.msra.mxu0 0.0
    %358 = vmatprep.subr.mxu0 0.0
    %359 = vmatpush1.msra.mxu0 0.0
    %360 = vmatprep.subr.mxu0 0.0
    %361 = vmatpush1.msra.mxu0 0.0
    %362 = vmatprep.subr.mxu0 0.0
    %363 = vmatpush1.msra.mxu0 0.0
    %364 = vmatprep.subr.mxu0 0.0
    %365 = vmatpush1.msra.mxu0 0.0
    %366 = vmatprep.subr.mxu0 0.0
    %367 = vmatpush1.msra.mxu0 0.0
    %368 = vmatprep.subr.mxu0 0.0
    %369 = vmatpush1.msra.mxu0 0.0
    %370 = vmatprep.subr.mxu0 0.0
    %371 = vmatpush1.msra.mxu0 0.0
    %372 = vmatprep.subr.mxu0 0.0
    %373 = vmatpush1.msra.mxu0 0.0
    %374 = vmatprep.subr.mxu0 0.0
    %375 = vmatpush1.msra.mxu0 0.0
    %376 = vmatprep.subr.mxu0 0.0
    %377 = vmatpush1.msra.mxu0 0.0
    %378 = vmatprep.subr.mxu0 0.0
    %379 = vmatpush1.msra.mxu0 0.0
    %380 = vmatprep.subr.mxu0 0.0
    %381 = vmatpush1.msra.mxu0 0.0
    %382 = vmatprep.subr.mxu0 0.0
    %383 = vmatpush1.msra.mxu0 0.0
    %384 = vmatprep.subr.mxu0 0.0
    %385 = vmatpush1.msra.mxu0 0.0
    %386 = vmatprep.subr.mxu0 0.0
    %387 = vmatpush1.msra.mxu0 0.0
    %388 = vmatprep.subr.mxu0 0.0
    %389 = vmatpush1.msra.mxu0 0.0
    %390 = vmatprep.subr.mxu0 0.0
    %391 = vmatpush1.msra.mxu0 0.0
    %392 = vmatprep.subr.mxu0 0.0
    %393 = vmatpush1.msra.mxu0 0.0
    %394 = vmatprep.subr.mxu0 0.0
    %395 = vmatpush1.msra.mxu0 0.0
    %396 = vmatprep.mubr.f32.mxu0 0.0
    %397 = vmatmul.mubr.f32.gmra.mrb[0].mxu0 %v330
    %v398 = vpop.f32.mrb[0].mxu0
    %v399 = vadd.f32 0.0, %v398
    %v400 = vpop.f32.mrb[0].mxu0
    %401 = vdwg.mxu0
    %v402 = vld [vmem:[#allocation10] sm:$0xff]
    %v403 = vld [vmem:[#allocation10 + $0x8] sm:$0xff]
    %404 = vmatprep.subr.mxu0 0.0
    %405 = vmatpush1.xpose.msra.mxu0 %v403
    %406 = vmatprep.subr.mxu0 0.0
    %407 = vmatpush1.xpose.msra.mxu0 0.0
    %408 = vmatprep.subr.mxu0 0.0
    %409 = vmatpush1.xpose.msra.mxu0 0.0
    %410 = vmatprep.subr.mxu0 0.0
    %411 = vmatpush1.xpose.msra.mxu0 0.0
    %412 = vmatprep.subr.mxu0 0.0
    %413 = vmatpush1.xpose.msra.mxu0 0.0
    %414 = vmatprep.subr.mxu0 0.0
    %415 = vmatpush1.xpose.msra.mxu0 0.0
    %416 = vmatprep.subr.mxu0 0.0
    %417 = vmatpush1.xpose.msra.mxu0 0.0
    %418 = vmatprep.subr.mxu0 0.0
    %419 = vmatpush1.xpose.msra.mxu0 0.0
    %420 = vmatprep.subr.mxu0 0.0
    %421 = vmatpush1.xpose.msra.mxu0 0.0
    %422 = vmatprep.subr.mxu0 0.0
    %423 = vmatpush1.xpose.msra.mxu0 0.0
    %424 = vmatprep.subr.mxu0 0.0
    %425 = vmatpush1.xpose.msra.mxu0 0.0
    %426 = vmatprep.subr.mxu0 0.0
    %427 = vmatpush1.xpose.msra.mxu0 0.0
    %428 = vmatprep.subr.mxu0 0.0
    %429 = vmatpush1.xpose.msra.mxu0 0.0
    %430 = vmatprep.subr.mxu0 0.0
    %431 = vmatpush1.xpose.msra.mxu0 0.0
    %432 = vmatprep.subr.mxu0 0.0
    %433 = vmatpush1.xpose.msra.mxu0 0.0
    %434 = vmatprep.subr.mxu0 0.0
    %435 = vmatpush1.xpose.msra.mxu0 0.0
    %436 = vmatprep.subr.mxu0 0.0
    %437 = vmatpush1.xpose.msra.mxu0 0.0
    %438 = vmatprep.subr.mxu0 0.0
    %439 = vmatpush1.xpose.msra.mxu0 0.0
    %440 = vmatprep.subr.mxu0 0.0
    %441 = vmatpush1.xpose.msra.mxu0 0.0
    %442 = vmatprep.subr.mxu0 0.0
    %443 = vmatpush1.xpose.msra.mxu0 0.0
    %444 = vmatprep.subr.mxu0 0.0
    %445 = vmatpush1.xpose.msra.mxu0 0.0
    %446 = vmatprep.subr.mxu0 0.0
    %447 = vmatpush1.xpose.msra.mxu0 0.0
    %448 = vmatprep.subr.mxu0 0.0
    %449 = vmatpush1.xpose.msra.mxu0 0.0
    %450 = vmatprep.subr.mxu0 0.0
    %451 = vmatpush1.xpose.msra.mxu0 0.0
    %452 = vmatprep.subr.mxu0 0.0
    %453 = vmatpush1.xpose.msra.mxu0 0.0
    %454 = vmatprep.subr.mxu0 0.0
    %455 = vmatpush1.xpose.msra.mxu0 0.0
    %456 = vmatprep.subr.mxu0 0.0
    %457 = vmatpush1.xpose.msra.mxu0 0.0
    %458 = vmatprep.subr.mxu0 0.0
    %459 = vmatpush1.xpose.msra.mxu0 0.0
    %460 = vmatprep.subr.mxu0 0.0
    %461 = vmatpush1.xpose.msra.mxu0 0.0
    %462 = vmatprep.subr.mxu0 0.0
    %463 = vmatpush1.xpose.msra.mxu0 0.0
    %464 = vmatprep.subr.mxu0 0.0
    %465 = vmatpush1.xpose.msra.mxu0 0.0
    %466 = vmatprep.subr.mxu0 0.0
    %467 = vmatpush1.xpose.msra.mxu0 0.0
    %468 = vmatprep.mubr.f32.mxu0 0.0
    %469 = vmatmul.mubr.f32.gmra.mrb[0].mxu0 %v399
    %v470 = vpop.f32.mrb[0].mxu0
    %v471 = vadd.f32 0.0, %v470
    %v472 = vpop.f32.mrb[0].mxu0
    %473 = vdwg.mxu0
    %474 = vmatprep.subr.mxu0 0.0
    %475 = vmatpush1.xpose.msra.mxu0 %v402
    %476 = vmatprep.subr.mxu0 0.0
    %477 = vmatpush1.xpose.msra.mxu0 0.0
    %478 = vmatprep.subr.mxu0 0.0
    %479 = vmatpush1.xpose.msra.mxu0 0.0
    %480 = vmatprep.subr.mxu0 0.0
    %481 = vmatpush1.xpose.msra.mxu0 0.0
    %482 = vmatprep.subr.mxu0 0.0
    %483 = vmatpush1.xpose.msra.mxu0 0.0
    %484 = vmatprep.subr.mxu0 0.0
    %485 = vmatpush1.xpose.msra.mxu0 0.0
    %486 = vmatprep.subr.mxu0 0.0
    %487 = vmatpush1.xpose.msra.mxu0 0.0
    %488 = vmatprep.subr.mxu0 0.0
    %489 = vmatpush1.xpose.msra.mxu0 0.0
    %490 = vmatprep.subr.mxu0 0.0
    %491 = vmatpush1.xpose.msra.mxu0 0.0
    %492 = vmatprep.subr.mxu0 0.0
    %493 = vmatpush1.xpose.msra.mxu0 0.0
    %494 = vmatprep.subr.mxu0 0.0
    %495 = vmatpush1.xpose.msra.mxu0 0.0
    %496 = vmatprep.subr.mxu0 0.0
    %497 = vmatpush1.xpose.msra.mxu0 0.0
    %498 = vmatprep.subr.mxu0 0.0
    %499 = vmatpush1.xpose.msra.mxu0 0.0
    %500 = vmatprep.subr.mxu0 0.0
    %501 = vmatpush1.xpose.msra.mxu0 0.0
    %502 = vmatprep.subr.mxu0 0.0
    %503 = vmatpush1.xpose.msra.mxu0 0.0
    %504 = vmatprep.subr.mxu0 0.0
    %505 = vmatpush1.xpose.msra.mxu0 0.0
    %506 = vmatprep.subr.mxu0 0.0
    %507 = vmatpush1.xpose.msra.mxu0 0.0
    %508 = vmatprep.subr.mxu0 0.0
    %509 = vmatpush1.xpose.msra.mxu0 0.0
    %510 = vmatprep.subr.mxu0 0.0
    %511 = vmatpush1.xpose.msra.mxu0 0.0
    %512 = vmatprep.subr.mxu0 0.0
    %513 = vmatpush1.xpose.msra.mxu0 0.0
    %514 = vmatprep.subr.mxu0 0.0
    %515 = vmatpush1.xpose.msra.mxu0 0.0
    %516 = vmatprep.subr.mxu0 0.0
    %517 = vmatpush1.xpose.msra.mxu0 0.0
    %518 = vmatprep.subr.mxu0 0.0
    %519 = vmatpush1.xpose.msra.mxu0 0.0
    %520 = vmatprep.subr.mxu0 0.0
    %521 = vmatpush1.xpose.msra.mxu0 0.0
    %522 = vmatprep.subr.mxu0 0.0
    %523 = vmatpush1.xpose.msra.mxu0 0.0
    %524 = vmatprep.subr.mxu0 0.0
    %525 = vmatpush1.xpose.msra.mxu0 0.0
    %526 = vmatprep.subr.mxu0 0.0
    %527 = vmatpush1.xpose.msra.mxu0 0.0
    %528 = vmatprep.subr.mxu0 0.0
    %529 = vmatpush1.xpose.msra.mxu0 0.0
    %530 = vmatprep.subr.mxu0 0.0
    %531 = vmatpush1.xpose.msra.mxu0 0.0
    %532 = vmatprep.subr.mxu0 0.0
    %533 = vmatpush1.xpose.msra.mxu0 0.0
    %534 = vmatprep.subr.mxu0 0.0
    %535 = vmatpush1.xpose.msra.mxu0 0.0
    %536 = vmatprep.subr.mxu0 0.0
    %537 = vmatpush1.xpose.msra.mxu0 0.0
    %538 = vmatprep.mubr.f32.mxu0 0.0
    %539 = vmatmul.mubr.f32.gmra.mrb[0].mxu0 %v84
    %v540 = vpop.f32.mrb[0].mxu0
    %v541 = vadd.f32 %v471, %v540
    %v542 = vpop.f32.mrb[0].mxu0
    %543 = vdwg.mxu0
    %v544 = vlaneseq
    %v545 = vshrl.u32 %v544, 7
    %v546 = vsub.s32 0, %v545
    %v547 = vrot.slane %v86, %v546
    %v548 = vadd.f32 %v541, %v547
    %549 = vst.msk [vmem:[#allocation11] sm:$0xf] %vm317, %v548
    // Predicated region
    $region46: #{tpu_custom_call.1} parent=1 // pred_check
      _
    $region47: #{tpu_custom_call.1} parent=1 // pred_check_branch
      %551 = sbr.rel (0) target = $region49
    $region48: #{tpu_custom_call.1} parent=1 // pred_region
      %s553 = ssub.s32 64, 64
      %554 = vsyncadd [#allocation4], %s553
      %s556 = sshll.u32 [#allocation11], 4
      %s557 = int_to_ptr.vmem [resolvable:$true] %s556
      %559 = dma.vmem_to_hbm [thread:$0]  %s557, 64, %s6, [#allocation4]
    $region49: #{tpu_custom_call.1} parent=1 // pred_fallthru
      _
    // Predicated region
    $region50: #{tpu_custom_call.1} parent=1 // pred_check
      _
    $region51: #{tpu_custom_call.1} parent=1 // pred_check_branch
      %561 = sbr.rel (0) target = $region53
    $region52: #{tpu_custom_call.1} parent=1 // pred_region
      %562 = dma.done [#allocation4], 64
    $region53: #{tpu_custom_call.1} parent=1 // pred_fallthru
      _
    %563 = vsyncpa [#allocation3], 1
    %564 = vsyncpa [#allocation6], 1
    %565 = vsyncpa [#allocation9], 1
    %566 = vsyncpa [#allocation4], 1

</llo_original>
